<compile_context>
chip_gen: v7x
topology: tpu7x:2x2x1
jax: 0.10.0
libtpu: 0.0.40
codegen_flags: <defaults>
</compile_context>

<pallas_src>
import jax
import jax.numpy as jnp
from jax.experimental import pallas as pl
from jax.experimental.pallas import tpu as pltpu

INPUT_SIZE = 3
HIDDEN_SIZE = 64
NUM_CLASSES = 25          # len(color_to_name)
OUT_PAD = 32              # lane-padded logits width: 32 * 4 B = 128-byte rows


def _cdiv(a, b):
    return (a + b - 1) // b


def _round_up(a, b):
    return _cdiv(a, b) * b


def mlp_kernel(x_ref, w1_ref, b1_ref, w2_ref, b2_ref, w3_ref, b3_ref, o_ref):
    x = x_ref[...]                        # [tm, 3]   f32
    w1 = w1_ref[...]                      # [3, 64]   f32
    # fc1 + ReLU on the VPU: K=3 is a degenerate contraction, so 3 broadcast
    # FMAs beat a padded MXU push.
    h = (x[:, 0:1] * w1[0:1, :]
         + x[:, 1:2] * w1[1:2, :]
         + x[:, 2:3] * w1[2:3, :]
         + b1_ref[...])
    h = jnp.maximum(h, 0.0)
    # fc2 + ReLU on the MXU, all-f32 with f32 accumulation (kernel is nowhere
    # near MXU-bound at these layer sizes).
    h = jnp.dot(h, w2_ref[...], preferred_element_type=jnp.float32)
    h = jnp.maximum(h + b2_ref[...], 0.0)
    # fc3 -> 32-lane padded logits (padded columns are exactly 0).
    h = jnp.dot(h, w3_ref[...], preferred_element_type=jnp.float32)
    o_ref[...] = (h + b3_ref[...]).astype(o_ref.dtype)


def _choose_tiling(n, tm_max, row_align=256, min_steps=2):
    """Pick (tm_eff, n_pad): choose a step count first, then the tile size that
    minimizes padded rows. Big batches keep >= min_steps grid steps so v7x's two
    TensorCores both get work; tiny batches run as one whole-batch block."""
    if n <= row_align:
        tm_eff = _round_up(max(n, 16), 16)     # 16-row granule
        return tm_eff, tm_eff
    steps = max(_cdiv(n, tm_max), min_steps)
    tm_eff = _round_up(_cdiv(n, steps), row_align)
    return tm_eff, _round_up(n, tm_eff)


def mlp_forward(x, params, *, tm_max=4096, return_padded=False):
    """x: [N, INPUT_SIZE] float32. Returns logits [N, NUM_CLASSES] float32.

    With return_padded=True the raw [n_pad, OUT_PAD] kernel output is returned
    (columns >= NUM_CLASSES are exactly 0, rows >= N are garbage), letting a
    fused consumer (softmax / argmax / loss) skip the extra HBM round trip of
    the wrapper slice.
    """
    w1, b1, w2, b2, w3, b3 = params
    N, D = x.shape
    assert D == INPUT_SIZE

    tm_eff, n_pad = _choose_tiling(N, tm_max)
    if n_pad != N:
        x = jnp.pad(x, ((0, n_pad - N), (0, 0)))
    grid = (n_pad // tm_eff,)

    # VMEM budget: the x and out tiles are double-buffered by the pipeline and
    # pad to 128 lanes in VMEM (512 B/row f32 each); in-kernel f32 temps add
    # roughly another 1.5 KiB/row. A generous 5 KiB/row + 2 MiB headroom covers
    # every generation (v5e scoped default is only 16 MiB; v7x physical 64 MiB).
    vmem_limit = max(16 << 20, min(int(tm_eff * 5 * 1024) + (2 << 20), 48 << 20))

    # Weights / biases are tiny: constant index_map -> DMA'd once, resident.
    full = lambda arr: pl.BlockSpec(arr.shape, lambda i: (0,) * arr.ndim)

    out = pl.pallas_call(
        mlp_kernel,
        out_shape=jax.ShapeDtypeStruct((n_pad, OUT_PAD), jnp.float32),
        grid_spec=pltpu.PrefetchScalarGridSpec(
            num_scalar_prefetch=0,
            grid=grid,
            in_specs=[
                pl.BlockSpec((tm_eff, INPUT_SIZE), lambda i: (i, 0)),  # x tile
                full(w1), full(b1),
                full(w2), full(b2),
                full(w3), full(b3),
            ],
            out_specs=pl.BlockSpec((tm_eff, OUT_PAD), lambda i: (i, 0)),
        ),
        compiler_params=pltpu.CompilerParams(
            dimension_semantics=("parallel",),
            vmem_limit_bytes=vmem_limit),
    )(x, w1, b1, w2, b2, w3, b3)

    if return_padded:
        return out
    return out[:N, :NUM_CLASSES]


def init_params(key):
    """nn.Linear-style init (uniform +-1/sqrt(fan_in)); weights stored [in, out]
    (PyTorch W.T), all float32. The last layer is zero-padded once to OUT_PAD
    output lanes so the kernel's final store covers 128-byte-aligned rows."""
    ks = jax.random.split(key, 6)

    def linear(kw, kb, fan_in, fan_out):
        bound = 1.0 / jnp.sqrt(jnp.float32(fan_in))
        w = jax.random.uniform(kw, (fan_in, fan_out), jnp.float32, -bound, bound)
        b = jax.random.uniform(kb, (1, fan_out), jnp.float32, -bound, bound)
        return w, b

    w1, b1 = linear(ks[0], ks[1], INPUT_SIZE, HIDDEN_SIZE)
    w2, b2 = linear(ks[2], ks[3], HIDDEN_SIZE, HIDDEN_SIZE)
    w3, b3 = linear(ks[4], ks[5], HIDDEN_SIZE, NUM_CLASSES)

    w3 = jnp.pad(w3, ((0, 0), (0, OUT_PAD - NUM_CLASSES)))
    b3 = jnp.pad(b3, ((0, 0), (0, OUT_PAD - NUM_CLASSES)))
    return (w1, b1, w2, b2, w3, b3)


def mlp_reference(x, params):
    """Pure-JAX float32 reference matching the PyTorch module's forward."""
    w1, b1, w2, b2, w3, b3 = params
    h = jnp.maximum(x @ w1 + b1, 0.0)
    h = jnp.maximum(h @ w2 + b2, 0.0)
    return (h @ w3 + b3)[:, :NUM_CLASSES]


if __name__ == "__main__":
    key = jax.random.PRNGKey(0)
    kx, kp = jax.random.split(key)
    params = init_params(kp)

    # Tolerance covers TPU default matmul precision (bf16 MXU passes) used by
    # both the kernel's dots and the XLA reference.
    tol = dict(atol=3e-2, rtol=3e-2)

    # 16: single whole-batch block; 300: ragged 2-step grid (2 x 256);
    # 3000: multi-row-tile path (2 x 1536).
    for n in (16, 300, 3000):
        x = jax.random.normal(jax.random.fold_in(kx, n),
                              (n, INPUT_SIZE), jnp.float32)
        out = jax.block_until_ready(mlp_forward(x, params))
        ref = mlp_reference(x, params)
        assert out.shape == (n, NUM_CLASSES), out.shape
        assert jnp.allclose(out, ref, **tol), float(jnp.max(jnp.abs(out - ref)))

    print("KERNEL_OK")
</pallas_src>

<mosaic_0001>
module attributes {stable_mosaic.version = 11 : i64} {
  func.func @mlp_kernel(%arg0: i32, %arg1: memref<16x3xf32, #tpu.memory_space<vmem>>, %arg2: memref<3x64xf32, #tpu.memory_space<vmem>>, %arg3: memref<1x64xf32, #tpu.memory_space<vmem>>, %arg4: memref<64x64xf32, #tpu.memory_space<vmem>>, %arg5: memref<1x64xf32, #tpu.memory_space<vmem>>, %arg6: memref<64x32xf32, #tpu.memory_space<vmem>>, %arg7: memref<1x32xf32, #tpu.memory_space<vmem>>, %arg8: memref<16x32xf32, #tpu.memory_space<vmem>>) attributes {dimension_semantics = [#tpu.dimension_semantics<parallel>], iteration_bounds = array<i64: 1>, scalar_prefetch = 0 : i64, scratch_operands = 0 : i64, tpu.core_type = #tpu.core_type<tc>, window_params = [{transform_indices = @transform_0, window_bounds = array<i64: 16, 3>}, {pipeline_mode = #tpu.pipeline_mode<synchronous>, transform_indices = @transform_1, window_bounds = array<i64: 3, 64>}, {pipeline_mode = #tpu.pipeline_mode<synchronous>, transform_indices = @transform_2, window_bounds = array<i64: 1, 64>}, {pipeline_mode = #tpu.pipeline_mode<synchronous>, transform_indices = @transform_3, window_bounds = array<i64: 64, 64>}, {pipeline_mode = #tpu.pipeline_mode<synchronous>, transform_indices = @transform_4, window_bounds = array<i64: 1, 64>}, {pipeline_mode = #tpu.pipeline_mode<synchronous>, transform_indices = @transform_5, window_bounds = array<i64: 64, 32>}, {pipeline_mode = #tpu.pipeline_mode<synchronous>, transform_indices = @transform_6, window_bounds = array<i64: 1, 32>}, {transform_indices = @transform_7, window_bounds = array<i64: 16, 32>}]} {
    %c0 = arith.constant 0 : index
    %c0_0 = arith.constant 0 : index
    %0 = vector.load %arg1[%c0, %c0_0] : memref<16x3xf32, #tpu.memory_space<vmem>>, vector<16x3xf32>
    %c0_1 = arith.constant 0 : index
    %c0_2 = arith.constant 0 : index
    %1 = vector.load %arg2[%c0_1, %c0_2] : memref<3x64xf32, #tpu.memory_space<vmem>>, vector<3x64xf32>
    %2 = vector.extract_strided_slice %0 {offsets = [0, 0], sizes = [16, 1], strides = [1, 1]} : vector<16x3xf32> to vector<16x1xf32>
    %3 = vector.extract_strided_slice %1 {offsets = [0, 0], sizes = [1, 64], strides = [1, 1]} : vector<3x64xf32> to vector<1x64xf32>
    %4 = vector.broadcast %2 : vector<16x1xf32> to vector<16x64xf32>
    %5 = vector.broadcast %3 : vector<1x64xf32> to vector<16x64xf32>
    %6 = arith.mulf %4, %5 : vector<16x64xf32>
    %7 = vector.extract_strided_slice %0 {offsets = [0, 1], sizes = [16, 1], strides = [1, 1]} : vector<16x3xf32> to vector<16x1xf32>
    %8 = vector.extract_strided_slice %1 {offsets = [1, 0], sizes = [1, 64], strides = [1, 1]} : vector<3x64xf32> to vector<1x64xf32>
    %9 = vector.broadcast %7 : vector<16x1xf32> to vector<16x64xf32>
    %10 = vector.broadcast %8 : vector<1x64xf32> to vector<16x64xf32>
    %11 = arith.mulf %9, %10 : vector<16x64xf32>
    %12 = arith.addf %6, %11 : vector<16x64xf32>
    %13 = vector.extract_strided_slice %0 {offsets = [0, 2], sizes = [16, 1], strides = [1, 1]} : vector<16x3xf32> to vector<16x1xf32>
    %14 = vector.extract_strided_slice %1 {offsets = [2, 0], sizes = [1, 64], strides = [1, 1]} : vector<3x64xf32> to vector<1x64xf32>
    %15 = vector.broadcast %13 : vector<16x1xf32> to vector<16x64xf32>
    %16 = vector.broadcast %14 : vector<1x64xf32> to vector<16x64xf32>
    %17 = arith.mulf %15, %16 : vector<16x64xf32>
    %18 = arith.addf %12, %17 : vector<16x64xf32>
    %c0_3 = arith.constant 0 : index
    %c0_4 = arith.constant 0 : index
    %19 = vector.load %arg3[%c0_3, %c0_4] : memref<1x64xf32, #tpu.memory_space<vmem>>, vector<1x64xf32>
    %20 = vector.broadcast %19 : vector<1x64xf32> to vector<16x64xf32>
    %21 = arith.addf %18, %20 : vector<16x64xf32>
    %cst = arith.constant 0.000000e+00 : f32
    %22 = vector.broadcast %cst : f32 to vector<16x64xf32>
    %23 = arith.maximumf %21, %22 : vector<16x64xf32>
    %c0_5 = arith.constant 0 : index
    %c0_6 = arith.constant 0 : index
    %24 = vector.load %arg4[%c0_5, %c0_6] : memref<64x64xf32, #tpu.memory_space<vmem>>, vector<64x64xf32>
    %cst_7 = arith.constant dense<0.000000e+00> : vector<16x64xf32>
    %25 = tpu.matmul %23, %24, %cst_7 {dimension_numbers = #tpu.dot_dimension_numbers<[1], [0], [0], [1], [0, 0, 1, 1], [], []>} : vector<16x64xf32>, vector<64x64xf32>, vector<16x64xf32> -> vector<16x64xf32>
    %c0_8 = arith.constant 0 : index
    %c0_9 = arith.constant 0 : index
    %26 = vector.load %arg5[%c0_8, %c0_9] : memref<1x64xf32, #tpu.memory_space<vmem>>, vector<1x64xf32>
    %27 = vector.broadcast %26 : vector<1x64xf32> to vector<16x64xf32>
    %28 = arith.addf %25, %27 : vector<16x64xf32>
    %cst_10 = arith.constant 0.000000e+00 : f32
    %29 = vector.broadcast %cst_10 : f32 to vector<16x64xf32>
    %30 = arith.maximumf %28, %29 : vector<16x64xf32>
    %c0_11 = arith.constant 0 : index
    %c0_12 = arith.constant 0 : index
    %31 = vector.load %arg6[%c0_11, %c0_12] : memref<64x32xf32, #tpu.memory_space<vmem>>, vector<64x32xf32>
    %cst_13 = arith.constant dense<0.000000e+00> : vector<16x32xf32>
    %32 = tpu.matmul %30, %31, %cst_13 {dimension_numbers = #tpu.dot_dimension_numbers<[1], [0], [0], [1], [0, 0, 1, 1], [], []>} : vector<16x64xf32>, vector<64x32xf32>, vector<16x32xf32> -> vector<16x32xf32>
    %c0_14 = arith.constant 0 : index
    %c0_15 = arith.constant 0 : index
    %33 = vector.load %arg7[%c0_14, %c0_15] : memref<1x32xf32, #tpu.memory_space<vmem>>, vector<1x32xf32>
    %34 = vector.broadcast %33 : vector<1x32xf32> to vector<16x32xf32>
    %35 = arith.addf %32, %34 : vector<16x32xf32>
    %c0_16 = arith.constant 0 : index
    %c0_17 = arith.constant 0 : index
    %36 = vector.load %arg8[%c0_16, %c0_17] : memref<16x32xf32, #tpu.memory_space<vmem>>, vector<16x32xf32>
    tpu.vector_store %arg8[%c0_16, %c0_17], %35 {strides = array<i32>} : memref<16x32xf32, #tpu.memory_space<vmem>>, vector<16x32xf32>,
    return
  }
  func.func @transform_0(%arg0: i32) -> (i32, i32) {
    %c0_i32 = arith.constant 0 : i32
    %c0_i32_0 = arith.constant 0 : i32
    return %arg0, %c0_i32 : i32, i32
  }
  func.func @transform_1(%arg0: i32) -> (i32, i32) {
    %c0_i32 = arith.constant 0 : i32
    %c0_i32_0 = arith.constant 0 : i32
    %c0_i32_1 = arith.constant 0 : i32
    return %c0_i32, %c0_i32_0 : i32, i32
  }
  func.func @transform_2(%arg0: i32) -> (i32, i32) {
    %c0_i32 = arith.constant 0 : i32
    %c0_i32_0 = arith.constant 0 : i32
    %c0_i32_1 = arith.constant 0 : i32
    return %c0_i32, %c0_i32_0 : i32, i32
  }
  func.func @transform_3(%arg0: i32) -> (i32, i32) {
    %c0_i32 = arith.constant 0 : i32
    %c0_i32_0 = arith.constant 0 : i32
    %c0_i32_1 = arith.constant 0 : i32
    return %c0_i32, %c0_i32_0 : i32, i32
  }
  func.func @transform_4(%arg0: i32) -> (i32, i32) {
    %c0_i32 = arith.constant 0 : i32
    %c0_i32_0 = arith.constant 0 : i32
    %c0_i32_1 = arith.constant 0 : i32
    return %c0_i32, %c0_i32_0 : i32, i32
  }
  func.func @transform_5(%arg0: i32) -> (i32, i32) {
    %c0_i32 = arith.constant 0 : i32
    %c0_i32_0 = arith.constant 0 : i32
    %c0_i32_1 = arith.constant 0 : i32
    return %c0_i32, %c0_i32_0 : i32, i32
  }
  func.func @transform_6(%arg0: i32) -> (i32, i32) {
    %c0_i32 = arith.constant 0 : i32
    %c0_i32_0 = arith.constant 0 : i32
    %c0_i32_1 = arith.constant 0 : i32
    return %c0_i32, %c0_i32_0 : i32, i32
  }
  func.func @transform_7(%arg0: i32) -> (i32, i32) {
    %c0_i32 = arith.constant 0 : i32
    %c0_i32_0 = arith.constant 0 : i32
    return %arg0, %c0_i32 : i32, i32
  }
}

</mosaic_0001>

<llo_original>
// kernel: tpu_custom_call.1
$region0: #{tpu_custom_call.1}
  #allocation0 [shape = 'u32[]', space=smem, size = 0x4, offset = 0x4, fixed_abs, tag = 'smem constant byte address 0x4 - core index']
  #allocation1 [shape = 'u32[144,128]{1,0:T(1,128)}', space=vmem, size = 0x12000, scoped, tag = 'internal scratch']
  %s0 = inlined_call_operand.vmem [shape: f32[16,3], index: 0, kind: input, shape index: {}]
  %s1 = inlined_call_operand.vmem [shape: f32[3,64], index: 1, kind: input, shape index: {}]
  %s2 = inlined_call_operand.vmem [shape: f32[1,64], index: 2, kind: input, shape index: {}]
  %s3 = inlined_call_operand.vmem [shape: f32[64,64], index: 3, kind: input, shape index: {}]
  %s4 = inlined_call_operand.vmem [shape: f32[1,64], index: 4, kind: input, shape index: {}]
  %s5 = inlined_call_operand.vmem [shape: f32[64,32], index: 5, kind: input, shape index: {}]
  %s6 = inlined_call_operand.vmem [shape: f32[1,32], index: 6, kind: input, shape index: {}]
  %s7 = inlined_call_operand.hbm [shape: f32[16,32], index: 7, kind: output, shape index: {}]
  %s8 = sld [smem:[#allocation0]]
  $region38: #{tpu_custom_call.1} parent=0
    _
  %s10 = ssub.s32 1, %s8
  %s11 = scalar_select 0, %s10, %s8
  $region1: #{tpu_custom_call.1} parent=0
    #allocation2 [shape = 'u8[8192]{0}', space=vmem, size = 0x2000, scoped, tag = 'output window, operand 0, single buffered']
    #allocation3 [shape = 's32[1]{0}', space=sflag, size = 0x4, scoped, tag = 'scoped memory for tpu_custom_call.1']
    %12 = vsyncpa [#allocation3], 0
    // Predicated region
    $region2: #{tpu_custom_call.1} parent=1 // pred_check
      _
    $region3: #{tpu_custom_call.1} parent=1 // pred_check_branch
      %14 = sbr.rel (0) target = $region5
    $region4: #{tpu_custom_call.1} parent=1 // pred_region
      _
    $region5: #{tpu_custom_call.1} parent=1 // pred_fallthru
      _
    // Predicated region
    $region6: #{tpu_custom_call.1} parent=1 // pred_check
      _
    $region7: #{tpu_custom_call.1} parent=1 // pred_check_branch
      %16 = sbr.rel (0) target = $region9
    $region8: #{tpu_custom_call.1} parent=1 // pred_region
      _
    $region9: #{tpu_custom_call.1} parent=1 // pred_fallthru
      _
    // Predicated region
    $region10: #{tpu_custom_call.1} parent=1 // pred_check
      _
    $region11: #{tpu_custom_call.1} parent=1 // pred_check_branch
      %18 = sbr.rel (0) target = $region13
    $region12: #{tpu_custom_call.1} parent=1 // pred_region
      _
    $region13: #{tpu_custom_call.1} parent=1 // pred_fallthru
      _
    // Predicated region
    $region14: #{tpu_custom_call.1} parent=1 // pred_check
      _
    $region15: #{tpu_custom_call.1} parent=1 // pred_check_branch
      %20 = sbr.rel (0) target = $region17
    $region16: #{tpu_custom_call.1} parent=1 // pred_region
      _
    $region17: #{tpu_custom_call.1} parent=1 // pred_fallthru
      _
    // Predicated region
    $region18: #{tpu_custom_call.1} parent=1 // pred_check
      _
    $region19: #{tpu_custom_call.1} parent=1 // pred_check_branch
      %22 = sbr.rel (0) target = $region21
    $region20: #{tpu_custom_call.1} parent=1 // pred_region
      _
    $region21: #{tpu_custom_call.1} parent=1 // pred_fallthru
      _
    // Predicated region
    $region22: #{tpu_custom_call.1} parent=1 // pred_check
      _
    $region23: #{tpu_custom_call.1} parent=1 // pred_check_branch
      %24 = sbr.rel (0) target = $region25
    $region24: #{tpu_custom_call.1} parent=1 // pred_region
      _
    $region25: #{tpu_custom_call.1} parent=1 // pred_fallthru
      _
    // Predicated region
    $region26: #{tpu_custom_call.1} parent=1 // pred_check
      _
    $region27: #{tpu_custom_call.1} parent=1 // pred_check_branch
      %26 = sbr.rel (0) target = $region29
    $region28: #{tpu_custom_call.1} parent=1 // pred_region
      _
    $region29: #{tpu_custom_call.1} parent=1 // pred_fallthru
      _
    %v27 = vld [vmem:[%s0] sm:$0xff]
    %v28 = vld [vmem:[%s0 + $0x8] sm:$0xff]
    %v29 = vld [vmem:[%s1] sm:$0x7]
    %31 = vset.pattern.permute.xlu0 0
    %32 = vperm.xlu0 %31, %v27
    %v33 = vpop.permute.xlu0 %32
    %36 = vset.pattern.permute.xlu0 0
    %37 = vperm.xlu0 %36, %v28
    %v38 = vpop.permute.xlu0 %37
    %v40 = vlaneseq
    %v41 = vshrl.u32 %v40, 7
    %v42 = vsub.s32 0, %v41
    %v43 = vrot.slane %v29, %v42
    %v44 = vmul.f32 %v33, %v43
    %v45 = vmul.f32 %v38, %v43
    %46 = vset.pattern.permute.xlu0 1
    %47 = vperm.xlu0 %46, %v27
    %v48 = vpop.permute.xlu0 %47
    %50 = vset.pattern.permute.xlu0 1
    %51 = vperm.xlu0 %50, %v28
    %v52 = vpop.permute.xlu0 %51
    %v54 = vlaneseq
    %v55 = vshrl.u32 %v54, 7
    %v56 = vsub.s32 1, %v55
    %v57 = vrot.slane %v29, %v56
    %v58 = vmul.f32 %v48, %v57
    %v59 = vmul.f32 %v52, %v57
    %v60 = vadd.f32 %v44, %v58
    %v61 = vadd.f32 %v45, %v59
    %62 = vset.pattern.permute.xlu0 2
    %63 = vperm.xlu0 %62, %v27
    %v64 = vpop.permute.xlu0 %63
    %66 = vset.pattern.permute.xlu0 2
    %67 = vperm.xlu0 %66, %v28
    %v68 = vpop.permute.xlu0 %67
    %v70 = vlaneseq
    %v71 = vshrl.u32 %v70, 7
    %v72 = vsub.s32 2, %v71
    %v73 = vrot.slane %v29, %v72
    %v74 = vmul.f32 %v64, %v73
    %v75 = vmul.f32 %v68, %v73
    %v76 = vadd.f32 %v60, %v74
    %v77 = vadd.f32 %v61, %v75
    %v78 = vld [vmem:[%s2] sm:$0x1]
    %v80 = vlaneseq
    %v81 = vshrl.u32 %v80, 7
    %v82 = vsub.s32 0, %v81
    %v83 = vrot.slane %v78, %v82
    %v85 = vadd.f32 %v76, %v83
    %v86 = vadd.f32 %v77, %v83
    %v87 = vmax.f32 %v85, 0.0
    %v88 = vmax.f32 %v86, 0.0
    %v89 = vld [vmem:[%s3] sm:$0xff]
    %v90 = vld [vmem:[%s3 + $0x8] sm:$0xff]
    %v91 = vld [vmem:[%s3 + $0x10] sm:$0xff]
    %v92 = vld [vmem:[%s3 + $0x18] sm:$0xff]
    %v93 = vld [vmem:[%s3 + $0x20] sm:$0xff]
    %v94 = vld [vmem:[%s3 + $0x28] sm:$0xff]
    %v95 = vld [vmem:[%s3 + $0x30] sm:$0xff]
    %v96 = vld [vmem:[%s3 + $0x38] sm:$0xff]
    %v97 = vld [vmem:[%s4] sm:$0x1]
    %v99 = vlaneseq
    %v100 = vshrl.u32 %v99, 7
    %v101 = vsub.s32 0, %v100
    %v102 = vrot.slane %v97, %v101
    %vm104 = vcmask 523264
    %v106 = vsel %vm104, %v87, 0
    %v109 = vsel %vm104, %v88, 0
    %111 = vmatprep.subr.mxu0 0.0
    %112 = vmatpush1.msra.mxu0 %v89
    %113 = vmatprep.subr.mxu0 0.0
    %114 = vmatpush1.msra.mxu0 %v90
    %115 = vmatprep.subr.mxu0 0.0
    %116 = vmatpush1.msra.mxu0 %v91
    %117 = vmatprep.subr.mxu0 0.0
    %118 = vmatpush1.msra.mxu0 %v92
    %119 = vmatprep.subr.mxu0 0.0
    %120 = vmatpush1.msra.mxu0 %v93
    %121 = vmatprep.subr.mxu0 0.0
    %122 = vmatpush1.msra.mxu0 %v94
    %123 = vmatprep.subr.mxu0 0.0
    %124 = vmatpush1.msra.mxu0 %v95
    %125 = vmatprep.subr.mxu0 0.0
    %126 = vmatpush1.msra.mxu0 %v96
    %127 = vmatprep.subr.mxu0 0.0
    %128 = vmatpush1.msra.mxu0 0.0
    %129 = vmatprep.subr.mxu0 0.0
    %130 = vmatpush1.msra.mxu0 0.0
    %131 = vmatprep.subr.mxu0 0.0
    %132 = vmatpush1.msra.mxu0 0.0
    %133 = vmatprep.subr.mxu0 0.0
    %134 = vmatpush1.msra.mxu0 0.0
    %135 = vmatprep.subr.mxu0 0.0
    %136 = vmatpush1.msra.mxu0 0.0
    %137 = vmatprep.subr.mxu0 0.0
    %138 = vmatpush1.msra.mxu0 0.0
    %139 = vmatprep.subr.mxu0 0.0
    %140 = vmatpush1.msra.mxu0 0.0
    %141 = vmatprep.subr.mxu0 0.0
    %142 = vmatpush1.msra.mxu0 0.0
    %143 = vmatprep.subr.mxu0 0.0
    %144 = vmatpush1.msra.mxu0 0.0
    %145 = vmatprep.subr.mxu0 0.0
    %146 = vmatpush1.msra.mxu0 0.0
    %147 = vmatprep.subr.mxu0 0.0
    %148 = vmatpush1.msra.mxu0 0.0
    %149 = vmatprep.subr.mxu0 0.0
    %150 = vmatpush1.msra.mxu0 0.0
    %151 = vmatprep.subr.mxu0 0.0
    %152 = vmatpush1.msra.mxu0 0.0
    %153 = vmatprep.subr.mxu0 0.0
    %154 = vmatpush1.msra.mxu0 0.0
    %155 = vmatprep.subr.mxu0 0.0
    %156 = vmatpush1.msra.mxu0 0.0
    %157 = vmatprep.subr.mxu0 0.0
    %158 = vmatpush1.msra.mxu0 0.0
    %159 = vmatprep.subr.mxu0 0.0
    %160 = vmatpush1.msra.mxu0 0.0
    %161 = vmatprep.subr.mxu0 0.0
    %162 = vmatpush1.msra.mxu0 0.0
    %163 = vmatprep.subr.mxu0 0.0
    %164 = vmatpush1.msra.mxu0 0.0
    %165 = vmatprep.subr.mxu0 0.0
    %166 = vmatpush1.msra.mxu0 0.0
    %167 = vmatprep.subr.mxu0 0.0
    %168 = vmatpush1.msra.mxu0 0.0
    %169 = vmatprep.subr.mxu0 0.0
    %170 = vmatpush1.msra.mxu0 0.0
    %171 = vmatprep.subr.mxu0 0.0
    %172 = vmatpush1.msra.mxu0 0.0
    %173 = vmatprep.subr.mxu0 0.0
    %174 = vmatpush1.msra.mxu0 0.0
    %175 = vmatprep.mubr.f32.mxu0 0.0
    %176 = vmatmul.mubr.f32.gmra.mrb[0].mxu0 %v106
    %v177 = vpop.f32.mrb[0].mxu0
    %v178 = vadd.f32 %v102, %v177
    %v179 = vpop.f32.mrb[0].mxu0
    %180 = vmatprep.mubr.f32.mxu0 0.0
    %181 = vmatmul.mubr.f32.gmra.mrb[0].mxu0 %v109
    %v182 = vpop.f32.mrb[0].mxu0
    %v183 = vadd.f32 %v102, %v182
    %v184 = vpop.f32.mrb[0].mxu0
    %185 = vdwg.mxu0
    %v186 = vmax.f32 %v178, 0.0
    %v187 = vmax.f32 %v183, 0.0
    %v188 = vld [vmem:[%s5] sm:$0xff]
    %v189 = vld [vmem:[%s5 + $0x8] sm:$0xff]
    %v190 = vld [vmem:[%s5 + $0x10] sm:$0xff]
    %v191 = vld [vmem:[%s5 + $0x18] sm:$0xff]
    %v192 = vld [vmem:[%s5 + $0x20] sm:$0xff]
    %v193 = vld [vmem:[%s5 + $0x28] sm:$0xff]
    %v194 = vld [vmem:[%s5 + $0x30] sm:$0xff]
    %v195 = vld [vmem:[%s5 + $0x38] sm:$0xff]
    %v196 = vld [vmem:[%s6] sm:$0x1]
    %v198 = vlaneseq
    %v199 = vshrl.u32 %v198, 7
    %v200 = vsub.s32 0, %v199
    %v201 = vrot.slane %v196, %v200
    %v204 = vsel %vm104, %v186, 0
    %v207 = vsel %vm104, %v187, 0
    %209 = vmatprep.subr.mxu0 0.0
    %210 = vmatpush1.msra.mxu0 %v188
    %211 = vmatprep.subr.mxu0 0.0
    %212 = vmatpush1.msra.mxu0 %v189
    %213 = vmatprep.subr.mxu0 0.0
    %214 = vmatpush1.msra.mxu0 %v190
    %215 = vmatprep.subr.mxu0 0.0
    %216 = vmatpush1.msra.mxu0 %v191
    %217 = vmatprep.subr.mxu0 0.0
    %218 = vmatpush1.msra.mxu0 %v192
    %219 = vmatprep.subr.mxu0 0.0
    %220 = vmatpush1.msra.mxu0 %v193
    %221 = vmatprep.subr.mxu0 0.0
    %222 = vmatpush1.msra.mxu0 %v194
    %223 = vmatprep.subr.mxu0 0.0
    %224 = vmatpush1.msra.mxu0 %v195
    %225 = vmatprep.subr.mxu0 0.0
    %226 = vmatpush1.msra.mxu0 0.0
    %227 = vmatprep.subr.mxu0 0.0
    %228 = vmatpush1.msra.mxu0 0.0
    %229 = vmatprep.subr.mxu0 0.0
    %230 = vmatpush1.msra.mxu0 0.0
    %231 = vmatprep.subr.mxu0 0.0
    %232 = vmatpush1.msra.mxu0 0.0
    %233 = vmatprep.subr.mxu0 0.0
    %234 = vmatpush1.msra.mxu0 0.0
    %235 = vmatprep.subr.mxu0 0.0
    %236 = vmatpush1.msra.mxu0 0.0
    %237 = vmatprep.subr.mxu0 0.0
    %238 = vmatpush1.msra.mxu0 0.0
    %239 = vmatprep.subr.mxu0 0.0
    %240 = vmatpush1.msra.mxu0 0.0
    %241 = vmatprep.subr.mxu0 0.0
    %242 = vmatpush1.msra.mxu0 0.0
    %243 = vmatprep.subr.mxu0 0.0
    %244 = vmatpush1.msra.mxu0 0.0
    %245 = vmatprep.subr.mxu0 0.0
    %246 = vmatpush1.msra.mxu0 0.0
    %247 = vmatprep.subr.mxu0 0.0
    %248 = vmatpush1.msra.mxu0 0.0
    %249 = vmatprep.subr.mxu0 0.0
    %250 = vmatpush1.msra.mxu0 0.0
    %251 = vmatprep.subr.mxu0 0.0
    %252 = vmatpush1.msra.mxu0 0.0
    %253 = vmatprep.subr.mxu0 0.0
    %254 = vmatpush1.msra.mxu0 0.0
    %255 = vmatprep.subr.mxu0 0.0
    %256 = vmatpush1.msra.mxu0 0.0
    %257 = vmatprep.subr.mxu0 0.0
    %258 = vmatpush1.msra.mxu0 0.0
    %259 = vmatprep.subr.mxu0 0.0
    %260 = vmatpush1.msra.mxu0 0.0
    %261 = vmatprep.subr.mxu0 0.0
    %262 = vmatpush1.msra.mxu0 0.0
    %263 = vmatprep.subr.mxu0 0.0
    %264 = vmatpush1.msra.mxu0 0.0
    %265 = vmatprep.subr.mxu0 0.0
    %266 = vmatpush1.msra.mxu0 0.0
    %267 = vmatprep.subr.mxu0 0.0
    %268 = vmatpush1.msra.mxu0 0.0
    %269 = vmatprep.subr.mxu0 0.0
    %270 = vmatpush1.msra.mxu0 0.0
    %271 = vmatprep.subr.mxu0 0.0
    %272 = vmatpush1.msra.mxu0 0.0
    %273 = vmatprep.mubr.f32.mxu0 0.0
    %274 = vmatmul.mubr.f32.gmra.mrb[0].mxu0 %v204
    %v275 = vpop.f32.mrb[0].mxu0
    %v276 = vadd.f32 %v201, %v275
    %v277 = vpop.f32.mrb[0].mxu0
    %278 = vmatprep.mubr.f32.mxu0 0.0
    %279 = vmatmul.mubr.f32.gmra.mrb[0].mxu0 %v207
    %v280 = vpop.f32.mrb[0].mxu0
    %v281 = vadd.f32 %v201, %v280
    %v282 = vpop.f32.mrb[0].mxu0
    %283 = vdwg.mxu0
    %vm284 = vcmask 261120
    %285 = vst.msk [vmem:[#allocation2] sm:$0xff] %vm284, %v276
    %286 = vst.msk [vmem:[#allocation2 + $0x8] sm:$0xff] %vm284, %v281
    // Predicated region
    $region30: #{tpu_custom_call.1} parent=1 // pred_check
      _
    $region31: #{tpu_custom_call.1} parent=1 // pred_check_branch
      %288 = sbr.rel (0) target = $region33
    $region32: #{tpu_custom_call.1} parent=1 // pred_region
      %s290 = ssub.s32 256, 256
      %291 = vsyncadd [#allocation3], %s290
      %s292 = sshll.u32 [#allocation2], 4
      %s293 = int_to_ptr.vmem [resolvable:$true] %s292
      %298 = dma.vmem_to_hbm [thread:$0]  %s293, 256, %s7, [#allocation3], 128, 128, 8
    $region33: #{tpu_custom_call.1} parent=1 // pred_fallthru
      _
    // Predicated region
    $region34: #{tpu_custom_call.1} parent=1 // pred_check
      _
    $region35: #{tpu_custom_call.1} parent=1 // pred_check_branch
      %300 = sbr.rel (0) target = $region37
    $region36: #{tpu_custom_call.1} parent=1 // pred_region
      %301 = dma.done [#allocation3], 256
    $region37: #{tpu_custom_call.1} parent=1 // pred_fallthru
      _
    %302 = vsyncpa [#allocation3], 1

</llo_original>
